<compile_context>
chip_gen: v6e
topology: v6e:2x2x1
jax: 0.10.0
libtpu: 0.0.40
codegen_flags: <defaults>
</compile_context>

<pallas_src>
import math

import jax
import jax.numpy as jnp
import numpy as np
from jax import lax
from jax.experimental import pallas as pl
from jax.experimental.pallas import tpu as pltpu

_MAX_LOGIT = math.log(1.0 / 0.01)   # clamp max, as in the PyTorch module
_NORM_EPS = 1e-12                   # F.normalize default eps
_NEG_BIG = -1e30                    # additive mask (finite -> no inf-inf NaN risk)
_MAX_BLOCK_B = 8                    # static unroll bound; production C*N keeps bb small anyway


# ---------------------------------------------------------------------------
# Shared in-kernel math (all rank-2 ops -> maximally Mosaic-friendly).
# ---------------------------------------------------------------------------
def _gram_stats(q, k):
    """q, k: (C, n) f32 -> (Gram (C,C), row sumsq(q) (C,1), col-layout sumsq(k) (1,C))."""
    nt = (((1,), (1,)), ((), ()))   # contract the lane (N) axis of both operands
    s = lax.dot_general(q, k, nt, preferred_element_type=jnp.float32)
    qss = jnp.sum(q * q, axis=-1, keepdims=True)                       # (C, 1)
    # (1, C) layout via a ones-row MXU contraction: avoids an in-kernel transpose.
    ones_row = jnp.ones((1, k.shape[-1]), jnp.float32)
    kss = lax.dot_general(ones_row, k * k, nt, preferred_element_type=jnp.float32)
    return s, qss, kss


def _finalize_wprime(s, qss, kss, scale, mask, w):
    """Gram + sum-of-squares -> w' = W @ blockdiag-softmax(normalized logits)."""
    eps2 = jnp.float32(_NORM_EPS * _NORM_EPS)
    # Deferred F.normalize: 1/max(||x||,eps) == rsqrt(max(sumsq, eps^2));
    # the per-head logit scale (clamp+exp done in the wrapper) is folded in here.
    row_scale = lax.rsqrt(jnp.maximum(qss, eps2)) * scale              # (C, 1)
    inv_k = lax.rsqrt(jnp.maximum(kss, eps2))                          # (1, C)
    logits = s * row_scale * inv_k + mask                              # (C, C)
    m = jnp.max(logits, axis=-1, keepdims=True)
    p = jnp.exp(logits - m)                                            # masked cols -> 0
    a_bd = p / jnp.sum(p, axis=-1, keepdims=True)                      # block-diag attention
    # attn_drop / proj_drop with p=0.0 (eval) -> identity.
    return jnp.dot(w, a_bd, preferred_element_type=jnp.float32)        # (C, C), W stationary


# ---------------------------------------------------------------------------
# Kernels.
# ---------------------------------------------------------------------------
def _csa_fused_kernel(qkv_ref, scale_ref, mask_ref, w_ref, b_ref, o_ref):
    """Single-pass kernel: whole (3, C, N) slab per batch element resident in VMEM."""
    scale = scale_ref[...]
    mask = mask_ref[...]
    w = w_ref[...]
    bias = b_ref[...]
    for i in range(o_ref.shape[0]):             # static unroll over the small batch tile
        q = qkv_ref[i, 0]                       # (C, N) — pure-offset views of the slab
        k = qkv_ref[i, 1]
        v = qkv_ref[i, 2]
        s, qss, kss = _gram_stats(q, k)
        wp = _finalize_wprime(s, qss, kss, scale, mask, w)
        o_ref[i] = jnp.dot(wp, v, preferred_element_type=jnp.float32) + bias


def _csa_gram_kernel(q_ref, k_ref, scale_ref, mask_ref, w_ref, wp_ref,
                     s_acc, qss_acc, kss_acc):
    """Pass 1 of the N-tiled path: accumulate Gram / sumsq over N, emit w' = W @ A_bd."""
    ni = pl.program_id(1)

    @pl.when(ni == 0)
    def _():
        s_acc[...] = jnp.zeros_like(s_acc)
        qss_acc[...] = jnp.zeros_like(qss_acc)
        kss_acc[...] = jnp.zeros_like(kss_acc)

    q = q_ref[0, 0]                              # (C, tile_n)
    k = k_ref[0, 0]                              # (C, tile_n)
    s, qss, kss = _gram_stats(q, k)
    s_acc[...] += s
    qss_acc[...] += qss
    kss_acc[...] += kss

    @pl.when(ni == pl.num_programs(1) - 1)
    def _():
        wp_ref[0] = _finalize_wprime(s_acc[...], qss_acc[...], kss_acc[...],
                                     scale_ref[...], mask_ref[...], w_ref[...])


def _csa_apply_kernel(wp_ref, v_ref, b_ref, o_ref):
    """Pass 2 of the N-tiled path: out_tile = w' @ v_tile + b."""
    o_ref[0] = jnp.dot(wp_ref[0], v_ref[0, 0],
                       preferred_element_type=jnp.float32) + b_ref[...]


# ---------------------------------------------------------------------------
# Capacity planning.
# ---------------------------------------------------------------------------
def _tpu_vmem_capacity():
    try:
        return int(pltpu.get_tpu_info().vmem_capacity_bytes)
    except Exception:
        return 64 << 20       # conservative fallback (v7x per-TensorCore VMEM)


def _fused_vmem_bytes(bb, C, Np):
    io = bb * 4 * C * Np * 4 * 2            # qkv in (3 planes) + out, f32, double-buffered
    interm = bb * 5 * C * C * 4             # s / logits / p / a_bd / w' live per element
    consts = (2 * C * C + 2 * C) * 4 * 2    # W, mask, scale, bias
    return io + interm + consts


def _pick_block_b(B, C, Np, budget, prefer_two_steps):
    """Largest divisor of B (<= _MAX_BLOCK_B) whose fused working set fits `budget`.
    On dual-TensorCore parts keep >= 2 grid steps so the 'parallel' axis shards."""
    cands = [c for c in range(min(B, _MAX_BLOCK_B), 0, -1)
             if B % c == 0 and _fused_vmem_bytes(c, C, Np) <= budget]
    if not cands:
        return None           # even bb=1 does not fit -> use the N-tiled two-pass path
    if prefer_two_steps and B >= 2:
        for c in cands:
            if B // c >= 2:
                return c
    return cands[0]


def _pick_tile_n(C, Np, budget):
    """Largest multiple-of-128 divisor of Np whose per-step working set fits `budget`."""
    m = Np // 128
    for k in range(m, 0, -1):
        if m % k:
            continue
        tn = 128 * k
        p1 = 2 * C * tn * 4 * 2 + (2 * C * C + C) * 4 * 2 + (C * C + 2 * C) * 4 + C * C * 4 * 2
        p2 = C * C * 4 * 2 + 2 * C * tn * 4 * 2 + C * 4 * 2
        if max(p1, p2) <= budget:
            return tn
    return 128


# ---------------------------------------------------------------------------
# Wrapper.
# ---------------------------------------------------------------------------
def channel_self_attention(qkv, logit_scale, proj_w, proj_b, sp=None, helper=True,
                           block_b=None, force_tiled=False, tile_n=None):
    """qkv: (B, L, 3*dim, H, W). Returns (B, L*dim, H, W) float32."""
    B, L, C3, H, W = qkv.shape
    d = C3 // 3
    C = L * d
    N = H * W
    N_pad = ((N + 127) // 128) * 128          # lane-dense output slabs

    x = qkv.astype(jnp.float32).reshape(B, L, 3, d, N)
    if sp is not None and helper:
        # Apply the 'helper' rescale to the v plane while the (B,3,C,N) layout is
        # being materialized anyway (no separate full-qkv concat/rewrite pass).
        # TODO(synk): pass mean(sp) as a (B,1,N) kernel input and multiply v in-VMEM.
        sp_m = jnp.mean(sp.astype(jnp.float32), axis=1).reshape(B, 1, 1, 1, N)
        x = jnp.concatenate([x[:, :, :2], x[:, :, 2:] * sp_m], axis=2)
    qkv_f = jnp.transpose(x, (0, 2, 1, 3, 4)).reshape(B, 3, C, N)
    if N_pad != N:
        qkv_f = jnp.pad(qkv_f, ((0, 0), (0, 0), (0, 0), (0, N_pad - N)))

    # clamp(max)+exp of the per-head logit scale, expanded to one value per channel row.
    scale_c = jnp.repeat(
        jnp.exp(jnp.minimum(logit_scale.reshape(L), _MAX_LOGIT)), d
    ).reshape(C, 1).astype(jnp.float32)
    # Block-diagonal (per-head) softmax mask, additive, precomputed once.
    head_id = jnp.arange(C, dtype=jnp.int32) // d
    mask = jnp.where(head_id[:, None] == head_id[None, :],
                     jnp.float32(0.0), jnp.float32(_NEG_BIG))
    w = proj_w.reshape(C, C).astype(jnp.float32)
    b = proj_b.reshape(C, 1).astype(jnp.float32)

    cap = _tpu_vmem_capacity()
    # Scoped VMEM: ~half of physical (64 MiB on 128 MiB parts, 32 MiB on v7x's 64 MiB).
    vmem_limit = min(int(cap * 0.5), 64 << 20)
    budget = int(vmem_limit * 0.8)
    multi_tc = cap <= (64 << 20)              # v7x heuristic: 64 MiB VMEM/TC, 2 TCs/chip

    if force_tiled:
        bb = None
    elif block_b is not None:
        assert B % block_b == 0, "block_b must divide batch"
        bb = block_b
    else:
        bb = _pick_block_b(B, C, N_pad, budget, prefer_two_steps=multi_tc)

    if bb is not None:
        # ---- Single fused pass ------------------------------------------------
        out = pl.pallas_call(
            _csa_fused_kernel,
            out_shape=jax.ShapeDtypeStruct((B, C, N_pad), jnp.float32),
            grid=(B // bb,),
            in_specs=[
                pl.BlockSpec((bb, 3, C, N_pad), lambda i: (i, 0, 0, 0)),
                pl.BlockSpec((C, 1), lambda i: (0, 0)),
                pl.BlockSpec((C, C), lambda i: (0, 0)),
                pl.BlockSpec((C, C), lambda i: (0, 0)),
                pl.BlockSpec((C, 1), lambda i: (0, 0)),
            ],
            out_specs=pl.BlockSpec((bb, C, N_pad), lambda i: (i, 0, 0)),
            compiler_params=pltpu.CompilerParams(
                dimension_semantics=("parallel",),
                vmem_limit_bytes=vmem_limit),
        )(qkv_f, scale_c, mask, w, b)
    else:
        # ---- Two-pass N-tiled path (large images / small VMEM) ----------------
        if tile_n is None:
            tile_n = _pick_tile_n(C, N_pad, budget)
        assert tile_n % 128 == 0 and N_pad % tile_n == 0
        n_tiles = N_pad // tile_n

        # Pass 1: accumulate Gram + sum-of-squares over N, emit w' = W @ A_bd.
        wp = pl.pallas_call(
            _csa_gram_kernel,
            out_shape=jax.ShapeDtypeStruct((B, C, C), jnp.float32),
            grid=(B, n_tiles),
            in_specs=[
                pl.BlockSpec((1, 1, C, tile_n), lambda bi, ni: (bi, 0, 0, ni)),  # q plane
                pl.BlockSpec((1, 1, C, tile_n), lambda bi, ni: (bi, 1, 0, ni)),  # k plane
                pl.BlockSpec((C, 1), lambda bi, ni: (0, 0)),
                pl.BlockSpec((C, C), lambda bi, ni: (0, 0)),
                pl.BlockSpec((C, C), lambda bi, ni: (0, 0)),
            ],
            out_specs=pl.BlockSpec((1, C, C), lambda bi, ni: (bi, 0, 0)),
            scratch_shapes=[pltpu.VMEM((C, C), jnp.float32),
                            pltpu.VMEM((C, 1), jnp.float32),
                            pltpu.VMEM((1, C), jnp.float32)],
            compiler_params=pltpu.CompilerParams(
                dimension_semantics=("parallel", "arbitrary"),
                vmem_limit_bytes=vmem_limit),
        )(qkv_f, qkv_f, scale_c, mask, w)

        # Pass 2: stream out = w' @ v + b over N tiles (v read here only).
        out = pl.pallas_call(
            _csa_apply_kernel,
            out_shape=jax.ShapeDtypeStruct((B, C, N_pad), jnp.float32),
            grid=(B, n_tiles),
            in_specs=[
                pl.BlockSpec((1, C, C), lambda bi, ni: (bi, 0, 0)),
                pl.BlockSpec((1, 1, C, tile_n), lambda bi, ni: (bi, 2, 0, ni)),  # v plane
                pl.BlockSpec((C, 1), lambda bi, ni: (0, 0)),
            ],
            out_specs=pl.BlockSpec((1, C, tile_n), lambda bi, ni: (bi, 0, ni)),
            compiler_params=pltpu.CompilerParams(
                dimension_semantics=("parallel", "parallel"),
                vmem_limit_bytes=vmem_limit),
        )(wp, qkv_f, b)

    if N_pad != N:
        out = out[..., :N]
    return out.reshape(B, C, H, W)


# ---------------------------------------------------------------------------
# Pure-JAX reference mirroring the PyTorch forward (sp=None, eval mode).
# ---------------------------------------------------------------------------
def _reference(qkv, logit_scale, proj_w, proj_b):
    B, L, C3, H, W = qkv.shape
    d = C3 // 3
    N = H * W
    qkv_f = qkv.reshape(B, L, C3, N)
    q, k, v = qkv_f[:, :, :d], qkv_f[:, :, d:2 * d], qkv_f[:, :, 2 * d:]
    qn = q / jnp.maximum(jnp.linalg.norm(q, axis=-1, keepdims=True), _NORM_EPS)
    kn = k / jnp.maximum(jnp.linalg.norm(k, axis=-1, keepdims=True), _NORM_EPS)
    attn = jnp.einsum('bldn,blen->blde', qn, kn)
    scale = jnp.exp(jnp.minimum(logit_scale, _MAX_LOGIT))       # (L,1,1)
    attn = attn * scale[None]
    attn = jax.nn.softmax(attn, axis=-1)
    x = jnp.einsum('blde,blen->bldn', attn, v)
    x = x.reshape(B, L * d, N)
    y = jnp.einsum('oc,bcn->bon', proj_w, x) + proj_b[None, :, None]
    return y.reshape(B, L * d, H, W)


if __name__ == "__main__":
    B, num_head, dim, H, W = 2, 2, 4, 16, 16
    C = num_head * dim

    key = jax.random.PRNGKey(0)
    k_qkv, k_w, k_b = jax.random.split(key, 3)

    qkv = jax.random.normal(k_qkv, (B, num_head, 3 * dim, H, W), dtype=jnp.float32)

    # Deterministic parameter init (matches module __init__ shapes).
    logit_scale = jnp.log(10.0 * jnp.ones((num_head, 1, 1), dtype=jnp.float32))
    proj_w = jax.random.normal(k_w, (C, C), dtype=jnp.float32) * 0.1  # Conv2d(C,C,1) weight
    proj_b = jax.random.normal(k_b, (C,), dtype=jnp.float32) * 0.1    # Conv2d bias

    ref = _reference(qkv, logit_scale, proj_w, proj_b)

    # Fused single-pass path (small N / plenty of VMEM).
    out = channel_self_attention(qkv, logit_scale, proj_w, proj_b, sp=None)
    out = jax.block_until_ready(out)
    assert out.shape == (B, C, H, W)
    np.testing.assert_allclose(np.asarray(out), np.asarray(ref), rtol=1e-4, atol=1e-4)

    # Two-pass N-tiled path (what large images / 64 MiB-VMEM parts take).
    out_t = channel_self_attention(qkv, logit_scale, proj_w, proj_b, sp=None,
                                   force_tiled=True, tile_n=128)
    out_t = jax.block_until_ready(out_t)
    np.testing.assert_allclose(np.asarray(out_t), np.asarray(ref), rtol=1e-4, atol=1e-4)

    print("KERNEL_OK")
</pallas_src>

<mosaic_0001>
module attributes {stable_mosaic.version = 11 : i64} {
  func.func @_csa_fused_kernel(%arg0: i32, %arg1: memref<1x3x8x256xf32, #tpu.memory_space<vmem>>, %arg2: memref<8x1xf32, #tpu.memory_space<vmem>>, %arg3: memref<8x8xf32, #tpu.memory_space<vmem>>, %arg4: memref<8x8xf32, #tpu.memory_space<vmem>>, %arg5: memref<8x1xf32, #tpu.memory_space<vmem>>, %arg6: memref<1x8x256xf32, #tpu.memory_space<vmem>>) attributes {dimension_semantics = [#tpu.dimension_semantics<parallel>], iteration_bounds = array<i64: 2>, scalar_prefetch = 0 : i64, scratch_operands = 0 : i64, tpu.core_type = #tpu.core_type<tc>, window_params = [{transform_indices = @transform_0, window_bounds = array<i64: 1, 3, 8, 256>}, {pipeline_mode = #tpu.pipeline_mode<synchronous>, transform_indices = @transform_1, window_bounds = array<i64: 8, 1>}, {pipeline_mode = #tpu.pipeline_mode<synchronous>, transform_indices = @transform_2, window_bounds = array<i64: 8, 8>}, {pipeline_mode = #tpu.pipeline_mode<synchronous>, transform_indices = @transform_3, window_bounds = array<i64: 8, 8>}, {pipeline_mode = #tpu.pipeline_mode<synchronous>, transform_indices = @transform_4, window_bounds = array<i64: 8, 1>}, {transform_indices = @transform_5, window_bounds = array<i64: 1, 8, 256>}]} {
    %c0 = arith.constant 0 : index
    %c0_0 = arith.constant 0 : index
    %0 = vector.load %arg2[%c0, %c0_0] : memref<8x1xf32, #tpu.memory_space<vmem>>, vector<8x1xf32>
    %c0_1 = arith.constant 0 : index
    %c0_2 = arith.constant 0 : index
    %1 = vector.load %arg3[%c0_1, %c0_2] : memref<8x8xf32, #tpu.memory_space<vmem>>, vector<8x8xf32>
    %c0_3 = arith.constant 0 : index
    %c0_4 = arith.constant 0 : index
    %2 = vector.load %arg4[%c0_3, %c0_4] : memref<8x8xf32, #tpu.memory_space<vmem>>, vector<8x8xf32>
    %c0_5 = arith.constant 0 : index
    %c0_6 = arith.constant 0 : index
    %3 = vector.load %arg5[%c0_5, %c0_6] : memref<8x1xf32, #tpu.memory_space<vmem>>, vector<8x1xf32>
    %c0_7 = arith.constant 0 : index
    %c0_8 = arith.constant 0 : index
    %c0_9 = arith.constant 0 : index
    %c0_10 = arith.constant 0 : index
    %4 = vector.load %arg1[%c0_7, %c0_8, %c0_9, %c0_10] : memref<1x3x8x256xf32, #tpu.memory_space<vmem>>, vector<1x1x8x256xf32>
    %5 = vector.shape_cast %4 : vector<1x1x8x256xf32> to vector<8x256xf32>
    %c0_11 = arith.constant 0 : index
    %c1 = arith.constant 1 : index
    %c0_12 = arith.constant 0 : index
    %c0_13 = arith.constant 0 : index
    %6 = vector.load %arg1[%c0_11, %c1, %c0_12, %c0_13] : memref<1x3x8x256xf32, #tpu.memory_space<vmem>>, vector<1x1x8x256xf32>
    %7 = vector.shape_cast %6 : vector<1x1x8x256xf32> to vector<8x256xf32>
    %c0_14 = arith.constant 0 : index
    %c2 = arith.constant 2 : index
    %c0_15 = arith.constant 0 : index
    %c0_16 = arith.constant 0 : index
    %8 = vector.load %arg1[%c0_14, %c2, %c0_15, %c0_16] : memref<1x3x8x256xf32, #tpu.memory_space<vmem>>, vector<1x1x8x256xf32>
    %9 = vector.shape_cast %8 : vector<1x1x8x256xf32> to vector<8x256xf32>
    %cst = arith.constant dense<0.000000e+00> : vector<8x8xf32>
    %10 = tpu.matmul %5, %7, %cst {dimension_numbers = #tpu.dot_dimension_numbers<[1], [1], [0], [0], [0, 0, 1, 0], [], []>} : vector<8x256xf32>, vector<8x256xf32>, vector<8x8xf32> -> vector<8x8xf32>
    %11 = arith.mulf %5, %5 : vector<8x256xf32>
    %cst_17 = arith.constant dense<0.000000e+00> : vector<8xf32>
    %12 = vector.multi_reduction <add>, %11, %cst_17 [1] : vector<8x256xf32> to vector<8xf32>
    %13 = vector.shape_cast %12 : vector<8xf32> to vector<8x1xf32>
    %cst_18 = arith.constant 1.000000e+00 : f32
    %14 = vector.broadcast %cst_18 : f32 to vector<1x256xf32>
    %15 = arith.mulf %7, %7 : vector<8x256xf32>
    %cst_19 = arith.constant dense<0.000000e+00> : vector<1x8xf32>
    %16 = tpu.matmul %14, %15, %cst_19 {dimension_numbers = #tpu.dot_dimension_numbers<[1], [1], [0], [0], [0, 0, 1, 0], [], []>} : vector<1x256xf32>, vector<8x256xf32>, vector<1x8xf32> -> vector<1x8xf32>
    %cst_20 = arith.constant 1.000000e-24 : f32
    %17 = vector.broadcast %cst_20 : f32 to vector<8x1xf32>
    %18 = arith.maximumf %13, %17 : vector<8x1xf32>
    %19 = math.rsqrt %18 : vector<8x1xf32>
    %20 = arith.mulf %19, %0 : vector<8x1xf32>
    %cst_21 = arith.constant 1.000000e-24 : f32
    %21 = vector.broadcast %cst_21 : f32 to vector<1x8xf32>
    %22 = arith.maximumf %16, %21 : vector<1x8xf32>
    %23 = math.rsqrt %22 : vector<1x8xf32>
    %24 = vector.broadcast %20 : vector<8x1xf32> to vector<8x8xf32>
    %25 = arith.mulf %10, %24 : vector<8x8xf32>
    %26 = vector.broadcast %23 : vector<1x8xf32> to vector<8x8xf32>
    %27 = arith.mulf %25, %26 : vector<8x8xf32>
    %28 = arith.addf %27, %1 : vector<8x8xf32>
    %cst_22 = arith.constant dense<0xFF800000> : vector<8xf32>
    %29 = vector.multi_reduction <maximumf>, %28, %cst_22 [1] : vector<8x8xf32> to vector<8xf32>
    %30 = vector.shape_cast %29 : vector<8xf32> to vector<8x1xf32>
    %31 = vector.broadcast %30 : vector<8x1xf32> to vector<8x8xf32>
    %32 = arith.subf %28, %31 : vector<8x8xf32>
    %33 = math.exp %32 : vector<8x8xf32>
    %cst_23 = arith.constant dense<0.000000e+00> : vector<8xf32>
    %34 = vector.multi_reduction <add>, %33, %cst_23 [1] : vector<8x8xf32> to vector<8xf32>
    %35 = vector.shape_cast %34 : vector<8xf32> to vector<8x1xf32>
    %36 = vector.broadcast %35 : vector<8x1xf32> to vector<8x8xf32>
    %37 = arith.divf %33, %36 : vector<8x8xf32>
    %cst_24 = arith.constant dense<0.000000e+00> : vector<8x8xf32>
    %38 = tpu.matmul %2, %37, %cst_24 {dimension_numbers = #tpu.dot_dimension_numbers<[1], [0], [0], [1], [0, 0, 1, 1], [], []>} : vector<8x8xf32>, vector<8x8xf32>, vector<8x8xf32> -> vector<8x8xf32>
    %cst_25 = arith.constant dense<0.000000e+00> : vector<8x256xf32>
    %39 = tpu.matmul %38, %9, %cst_25 {dimension_numbers = #tpu.dot_dimension_numbers<[1], [0], [0], [1], [0, 0, 1, 1], [], []>} : vector<8x8xf32>, vector<8x256xf32>, vector<8x256xf32> -> vector<8x256xf32>
    %40 = vector.broadcast %3 : vector<8x1xf32> to vector<8x256xf32>
    %41 = arith.addf %39, %40 : vector<8x256xf32>
    %c0_26 = arith.constant 0 : index
    %c0_27 = arith.constant 0 : index
    %c0_28 = arith.constant 0 : index
    %42 = vector.load %arg6[%c0_26, %c0_27, %c0_28] : memref<1x8x256xf32, #tpu.memory_space<vmem>>, vector<1x8x256xf32>
    %43 = vector.shape_cast %42 : vector<1x8x256xf32> to vector<8x256xf32>
    %44 = vector.shape_cast %41 : vector<8x256xf32> to vector<1x8x256xf32>
    tpu.vector_store %arg6[%c0_26, %c0_27, %c0_28], %44 {strides = array<i32>} : memref<1x8x256xf32, #tpu.memory_space<vmem>>, vector<1x8x256xf32>,
    return
  }
  func.func @transform_0(%arg0: i32) -> (i32, i32, i32, i32) {
    %c0_i32 = arith.constant 0 : i32
    %c0_i32_0 = arith.constant 0 : i32
    %c0_i32_1 = arith.constant 0 : i32
    %c0_i32_2 = arith.constant 0 : i32
    return %arg0, %c0_i32, %c0_i32_0, %c0_i32_1 : i32, i32, i32, i32
  }
  func.func @transform_1(%arg0: i32) -> (i32, i32) {
    %c0_i32 = arith.constant 0 : i32
    %c0_i32_0 = arith.constant 0 : i32
    %c0_i32_1 = arith.constant 0 : i32
    return %c0_i32, %c0_i32_0 : i32, i32
  }
  func.func @transform_2(%arg0: i32) -> (i32, i32) {
    %c0_i32 = arith.constant 0 : i32
    %c0_i32_0 = arith.constant 0 : i32
    %c0_i32_1 = arith.constant 0 : i32
    return %c0_i32, %c0_i32_0 : i32, i32
  }
  func.func @transform_3(%arg0: i32) -> (i32, i32) {
    %c0_i32 = arith.constant 0 : i32
    %c0_i32_0 = arith.constant 0 : i32
    %c0_i32_1 = arith.constant 0 : i32
    return %c0_i32, %c0_i32_0 : i32, i32
  }
  func.func @transform_4(%arg0: i32) -> (i32, i32) {
    %c0_i32 = arith.constant 0 : i32
    %c0_i32_0 = arith.constant 0 : i32
    %c0_i32_1 = arith.constant 0 : i32
    return %c0_i32, %c0_i32_0 : i32, i32
  }
  func.func @transform_5(%arg0: i32) -> (i32, i32, i32) {
    %c0_i32 = arith.constant 0 : i32
    %c0_i32_0 = arith.constant 0 : i32
    %c0_i32_1 = arith.constant 0 : i32
    return %arg0, %c0_i32, %c0_i32_0 : i32, i32, i32
  }
}

</mosaic_0001>

<llo_original>
// kernel: tpu_custom_call.1
$region0: #{tpu_custom_call.1}
  #allocation0 [shape = 'u32[]', space=smem, size = 0x4, offset = 0x4, fixed_abs, tag = 'smem constant byte address 0x4 - core index']
  #allocation1 [shape = 'u32[144,128]{1,0:T(1,128)}', space=vmem, size = 0x12000, scoped, tag = 'internal scratch']
  %s0 = inlined_call_operand.hbm [shape: f32[2,3,8,256], index: 0, kind: input, shape index: {}]
  %s1 = inlined_call_operand.vmem [shape: f32[8,1], index: 1, kind: input, shape index: {}]
  %s2 = inlined_call_operand.vmem [shape: f32[8,8], index: 2, kind: input, shape index: {}]
  %s3 = inlined_call_operand.vmem [shape: f32[8,8], index: 3, kind: input, shape index: {}]
  %s4 = inlined_call_operand.vmem [shape: f32[8,1], index: 4, kind: input, shape index: {}]
  %s5 = inlined_call_operand.hbm [shape: f32[2,8,256], index: 5, kind: output, shape index: {}]
  %s6 = sld [smem:[#allocation0]]
  $region57: #{tpu_custom_call.1} parent=0
    _
  %s8 = ssub.s32 1, %s6
  %s9 = scalar_select 0, %s8, %s6
  $region1: #{tpu_custom_call.1} parent=0
    #allocation2 [shape = 'u8[49152]{0}', space=vmem, size = 0xc000, scoped, tag = 'input window, operand 0']
    #allocation3 [shape = 's32[2]{0}', space=sflag, size = 0x8, scoped, tag = 'scoped memory for tpu_custom_call.1']
    #allocation4 [shape = 's32[2]{0}', space=sflag, size = 0x8, scoped, tag = 'scoped memory for tpu_custom_call.1']
    #allocation5 [shape = 'u8[16384]{0}', space=vmem, size = 0x4000, scoped, tag = 'output window, operand 0']
    %10 = vsyncpa [#allocation3], 0
    %s11 = scalar_lea.sflag [#allocation3], 1
    %12 = vsyncpa %s11, 0
    %13 = vsyncpa [#allocation4], 0
    %s14 = scalar_lea.sflag [#allocation4], 1
    %15 = vsyncpa %s14, 0
    loop: start=0, step=1, limit=4
    $region2: #{tpu_custom_call.1} parent=1 // loop_pre_header
      _
    $region3: #{tpu_custom_call.1} parent=1 // loop_header
      %s17 = sphi 0, %s21
      %p18 = scmp.ge.s32.totalorder %s17, 4
      %s27 = sphi 0, %s29
      %s30 = sphi 0, %s27
      %s31 = sphi 0, %s30
      %s47 = sphi 0, %s31
      %s51 = sphi 0, %s51
      %s53 = sphi 0, %s51
      %s54 = sphi 0, %s53
      %s68 = sphi 0, %s54
      %s72 = sphi 0, %s72
      %s74 = sphi 0, %s72
      %s75 = sphi 0, %s74
      %s89 = sphi 0, %s75
      %s93 = sphi 0, %s93
      %s95 = sphi 0, %s93
      %s96 = sphi 0, %s95
      %s110 = sphi 0, %s96
      %s114 = sphi 0, %s114
      %s116 = sphi 0, %s114
      %s117 = sphi 0, %s116
      %s131 = sphi 0, %s117
      %s137 = sphi 0, %s139
      %s140 = sphi 0, %s137
      %s141 = sphi 0, %s140
      %s157 = sphi 0, %s141
    $region4: #{tpu_custom_call.1} parent=1 // loop_header_branch
      %20 = sbr.rel (%p18) target = $region8
    $region5: #{tpu_custom_call.1} parent=1 // loop_body
      %s22 = ssub.s32 %s17, 1
      %s23 = ssub.s32 %s17, 2
      %s24 = sadd.s32 %s17, 1
      %s25 = ssub.s32 %s17, %s24
      %p26 = scmp.eq.s32.totalorder %s25, 0
      %s28 = sadd.s32 %s27, 1
      %s29 = scalar_select %p26, %s27, %s28
      %p32 = pneg %p26
      %p33 = scmp.eq.s32.totalorder %s17, 1
      %p34 = por %p32, %p33
      %p35 = scmp.ne.s32.totalorder %s27, %s30
      %p36 = scmp.eq.s32.totalorder %s17, 0
      %p37 = por %p35, %p36
      %p38 = scmp.ne.s32.totalorder %s27, %s30
      %p39 = scmp.eq.s32.totalorder %s22, 1
      %p40 = por %p38, %p39
      %p41 = scmp.ne.s32.totalorder %s30, %s31
      %p42 = scmp.eq.s32.totalorder %s22, 0
      %p43 = por %p41, %p42
      %p44 = scmp.ne.s32.totalorder %s30, %s31
      %p45 = scmp.eq.s32.totalorder %s23, 1
      %p46 = por %p44, %p45
      %p48 = scmp.ne.s32.totalorder %s31, %s47
      %p49 = scmp.eq.s32.totalorder %s23, 0
      %p50 = por %p48, %p49
      %s52 = sadd.s32 %s51, 1
      %p55 = scmp.eq.s32.totalorder %s17, 1
      %p56 = scmp.ne.s32.totalorder %s51, %s53
      %p57 = scmp.eq.s32.totalorder %s17, 0
      %p58 = por %p56, %p57
      %p59 = scmp.ne.s32.totalorder %s51, %s53
      %p60 = scmp.eq.s32.totalorder %s22, 1
      %p61 = por %p59, %p60
      %p62 = scmp.ne.s32.totalorder %s53, %s54
      %p63 = scmp.eq.s32.totalorder %s22, 0
      %p64 = por %p62, %p63
      %p65 = scmp.ne.s32.totalorder %s53, %s54
      %p66 = scmp.eq.s32.totalorder %s23, 1
      %p67 = por %p65, %p66
      %p69 = scmp.ne.s32.totalorder %s54, %s68
      %p70 = scmp.eq.s32.totalorder %s23, 0
      %p71 = por %p69, %p70
      %s73 = sadd.s32 %s72, 1
      %p76 = scmp.eq.s32.totalorder %s17, 1
      %p77 = scmp.ne.s32.totalorder %s72, %s74
      %p78 = scmp.eq.s32.totalorder %s17, 0
      %p79 = por %p77, %p78
      %p80 = scmp.ne.s32.totalorder %s72, %s74
      %p81 = scmp.eq.s32.totalorder %s22, 1
      %p82 = por %p80, %p81
      %p83 = scmp.ne.s32.totalorder %s74, %s75
      %p84 = scmp.eq.s32.totalorder %s22, 0
      %p85 = por %p83, %p84
      %p86 = scmp.ne.s32.totalorder %s74, %s75
      %p87 = scmp.eq.s32.totalorder %s23, 1
      %p88 = por %p86, %p87
      %p90 = scmp.ne.s32.totalorder %s75, %s89
      %p91 = scmp.eq.s32.totalorder %s23, 0
      %p92 = por %p90, %p91
      %s94 = sadd.s32 %s93, 1
      %p97 = scmp.eq.s32.totalorder %s17, 1
      %p98 = scmp.ne.s32.totalorder %s93, %s95
      %p99 = scmp.eq.s32.totalorder %s17, 0
      %p100 = por %p98, %p99
      %p101 = scmp.ne.s32.totalorder %s93, %s95
      %p102 = scmp.eq.s32.totalorder %s22, 1
      %p103 = por %p101, %p102
      %p104 = scmp.ne.s32.totalorder %s95, %s96
      %p105 = scmp.eq.s32.totalorder %s22, 0
      %p106 = por %p104, %p105
      %p107 = scmp.ne.s32.totalorder %s95, %s96
      %p108 = scmp.eq.s32.totalorder %s23, 1
      %p109 = por %p107, %p108
      %p111 = scmp.ne.s32.totalorder %s96, %s110
      %p112 = scmp.eq.s32.totalorder %s23, 0
      %p113 = por %p111, %p112
      %s115 = sadd.s32 %s114, 1
      %p118 = scmp.eq.s32.totalorder %s17, 1
      %p119 = scmp.ne.s32.totalorder %s114, %s116
      %p120 = scmp.eq.s32.totalorder %s17, 0
      %p121 = por %p119, %p120
      %p122 = scmp.ne.s32.totalorder %s114, %s116
      %p123 = scmp.eq.s32.totalorder %s22, 1
      %p124 = por %p122, %p123
      %p125 = scmp.ne.s32.totalorder %s116, %s117
      %p126 = scmp.eq.s32.totalorder %s22, 0
      %p127 = por %p125, %p126
      %p128 = scmp.ne.s32.totalorder %s116, %s117
      %p129 = scmp.eq.s32.totalorder %s23, 1
      %p130 = por %p128, %p129
      %p132 = scmp.ne.s32.totalorder %s117, %s131
      %p133 = scmp.eq.s32.totalorder %s23, 0
      %p134 = por %p132, %p133
      %s135 = ssub.s32 %s17, %s24
      %p136 = scmp.eq.s32.totalorder %s135, 0
      %s138 = sadd.s32 %s137, 1
      %s139 = scalar_select %p136, %s137, %s138
      %p142 = pneg %p136
      %p143 = scmp.eq.s32.totalorder %s17, 1
      %p144 = por %p142, %p143
      %p145 = scmp.ne.s32.totalorder %s137, %s140
      %p146 = scmp.eq.s32.totalorder %s17, 0
      %p147 = por %p145, %p146
      %p148 = scmp.ne.s32.totalorder %s137, %s140
      %p149 = scmp.eq.s32.totalorder %s22, 1
      %p150 = por %p148, %p149
      %p151 = scmp.ne.s32.totalorder %s140, %s141
      %p152 = scmp.eq.s32.totalorder %s22, 0
      %p153 = por %p151, %p152
      %p154 = scmp.ne.s32.totalorder %s140, %s141
      %p155 = scmp.eq.s32.totalorder %s23, 1
      %p156 = por %p154, %p155
      %p158 = scmp.ne.s32.totalorder %s141, %s157
      %p159 = scmp.eq.s32.totalorder %s23, 0
      %p160 = por %p158, %p159
      %p161 = scmp.le.s32.totalorder 1, %s17
      %p162 = scmp.lt.s32.totalorder %s17, 3
      %p163 = pnand %p161, %p162
      %p164 = pneg %p163
      // Predicated region
      $region9: #{tpu_custom_call.1} parent=5 // pred_check
        _
      $region10: #{tpu_custom_call.1} parent=5 // pred_check_branch
        %166 = sbr.rel (%p163) target = $region12
      $region11: #{tpu_custom_call.1} parent=5 // pred_region
        %s167 = ssub.s32 %s17, 1
        // Predicated region
        $region13: #{tpu_custom_call.1} parent=11 // pred_check
          %p168 = pneg %p64
        $region14: #{tpu_custom_call.1} parent=11 // pred_check_branch
          %170 = sbr.rel (%p168) target = $region16
        $region15: #{tpu_custom_call.1} parent=11 // pred_region
          _
        $region16: #{tpu_custom_call.1} parent=11 // pred_fallthru
          _
        // Predicated region
        $region17: #{tpu_custom_call.1} parent=11 // pred_check
          %p171 = pneg %p85
        $region18: #{tpu_custom_call.1} parent=11 // pred_check_branch
          %173 = sbr.rel (%p171) target = $region20
        $region19: #{tpu_custom_call.1} parent=11 // pred_region
          _
        $region20: #{tpu_custom_call.1} parent=11 // pred_fallthru
          _
        // Predicated region
        $region21: #{tpu_custom_call.1} parent=11 // pred_check
          %p174 = pneg %p106
        $region22: #{tpu_custom_call.1} parent=11 // pred_check_branch
          %176 = sbr.rel (%p174) target = $region24
        $region23: #{tpu_custom_call.1} parent=11 // pred_region
          _
        $region24: #{tpu_custom_call.1} parent=11 // pred_fallthru
          _
        // Predicated region
        $region25: #{tpu_custom_call.1} parent=11 // pred_check
          %p177 = pneg %p127
        $region26: #{tpu_custom_call.1} parent=11 // pred_check_branch
          %179 = sbr.rel (%p177) target = $region28
        $region27: #{tpu_custom_call.1} parent=11 // pred_region
          _
        $region28: #{tpu_custom_call.1} parent=11 // pred_fallthru
          _
      $region12: #{tpu_custom_call.1} parent=5 // pred_fallthru
        _
      %p180 = scmp.lt.s32.totalorder %s17, 2
      // Predicated region
      $region29: #{tpu_custom_call.1} parent=5 // pred_check
        %p181 = pneg %p180
      $region30: #{tpu_custom_call.1} parent=5 // pred_check_branch
        %183 = sbr.rel (%p181) target = $region32
      $region31: #{tpu_custom_call.1} parent=5 // pred_region
        // Predicated region
        $region33: #{tpu_custom_call.1} parent=31 // pred_check
          %p184 = pneg %p37
        $region34: #{tpu_custom_call.1} parent=31 // pred_check_branch
          %186 = sbr.rel (%p184) target = $region36
        $region35: #{tpu_custom_call.1} parent=31 // pred_region
          %s187 = sand.u32 %s27, 1
          %s188 = scalar_lea.sflag [#allocation3], %s187
          %s189 = sand.u32 %s27, 1
          %s190 = smul.addr %s189, 48
          %s191 = scalar_lea.vmem [#allocation2], %s190
          %s193 = ssub.s32 768, 768
          %194 = vsyncadd %s188, %s193
          %s195 = smul.addr %s17, 6
          %s196 = smul.addr %s195, 128
          %s197 = scalar_lea.hbm %s0, %s196
          %s198 = sshll.u32 %s191, 4
          %s199 = int_to_ptr.vmem [resolvable:$true] %s198
          %204 = dma.hbm_to_vmem [thread:$0]  %s197, 768, %s199, %s188, 256, 256, 16
        $region36: #{tpu_custom_call.1} parent=31 // pred_fallthru
          _
      $region32: #{tpu_custom_call.1} parent=5 // pred_fallthru
        _
      %p205 = scmp.le.s32.totalorder 1, %s17
      %p206 = scmp.lt.s32.totalorder %s17, 3
      %p207 = pnand %p205, %p206
      %p208 = pneg %p207
      // Predicated region
      $region37: #{tpu_custom_call.1} parent=5 // pred_check
        _
      $region38: #{tpu_custom_call.1} parent=5 // pred_check_branch
        %210 = sbr.rel (%p207) target = $region40
      $region39: #{tpu_custom_call.1} parent=5 // pred_region
        %s211 = ssub.s32 %s17, 1
        %s212 = sand.u32 %s30, 1
        %s213 = scalar_lea.sflag [#allocation3], %s212
        %s214 = sand.u32 %s30, 1
        %s215 = smul.addr %s214, 48
        %s216 = scalar_lea.vmem [#allocation2], %s215
        // Predicated region
        $region41: #{tpu_custom_call.1} parent=39 // pred_check
          %p217 = pneg %p43
        $region42: #{tpu_custom_call.1} parent=39 // pred_check_branch
          %219 = sbr.rel (%p217) target = $region44
        $region43: #{tpu_custom_call.1} parent=39 // pred_region
          %220 = dma.done %s213, 768
        $region44: #{tpu_custom_call.1} parent=39 // pred_fallthru
          _
        %s221 = sand.u32 %s30, 1
        %s222 = scalar_lea.sflag [#allocation3], %s221
        %s223 = sand.u32 %s30, 1
        %s224 = smul.addr %s223, 48
        %s225 = scalar_lea.vmem [#allocation2], %s224
        %p226 = pneg %p43
        %p227 = pneg %p40
        %p228 = pneg %p64
        %p229 = pneg %p61
        %p230 = pneg %p85
        %p231 = pneg %p82
        %p232 = pneg %p106
        %p233 = pneg %p103
        %p234 = pneg %p127
        %p235 = pneg %p124
        %p236 = pneg %p153
        %p237 = pneg %p150
        %s238 = sand.u32 %s140, 1
        %s239 = scalar_lea.sflag [#allocation4], %s238
        %s240 = sand.u32 %s140, 1
        %s241 = smul.addr %s240, 16
        %s242 = scalar_lea.vmem [#allocation5], %s241
        %v243 = vld [vmem:[%s1] sm:$0xff]
        %v244 = vld [vmem:[%s2] sm:$0xff]
        %v245 = vld [vmem:[%s3] sm:$0xff]
        %v246 = vld [vmem:[%s4] sm:$0xff]
        %v247 = vld [vmem:[%s216] sm:$0xff]
        %v248 = vld [vmem:[%s216 + $0x8] sm:$0xff]
        %s249 = scalar_lea.vmem %s216, 16 [#allocation2]
        %v250 = vld [vmem:[%s249] sm:$0xff]
        %v251 = vld [vmem:[%s249 + $0x8] sm:$0xff]
        %s252 = scalar_lea.vmem %s216, 32 [#allocation2]
        %v253 = vld [vmem:[%s252] sm:$0xff]
        %v254 = vld [vmem:[%s252 + $0x8] sm:$0xff]
        %255 = vmatprep.subr.mxu0 0.0
        %256 = vmatpush1.xpose.msra.mxu0 0.0
        %257 = vmatprep.subr.mxu0 0.0
        %258 = vmatpush1.xpose.msra.mxu0 0.0
        %259 = vmatprep.subr.mxu0 0.0
        %260 = vmatpush1.xpose.msra.mxu0 0.0
        %261 = vmatprep.subr.mxu0 0.0
        %262 = vmatpush1.xpose.msra.mxu0 0.0
        %263 = vmatprep.subr.mxu0 0.0
        %264 = vmatpush1.xpose.msra.mxu0 0.0
        %265 = vmatprep.subr.mxu0 0.0
        %266 = vmatpush1.xpose.msra.mxu0 0.0
        %267 = vmatprep.subr.mxu0 0.0
        %268 = vmatpush1.xpose.msra.mxu0 0.0
        %269 = vmatprep.subr.mxu0 0.0
        %270 = vmatpush1.xpose.msra.mxu0 0.0
        %271 = vmatprep.subr.mxu0 0.0
        %272 = vmatpush1.xpose.msra.mxu0 0.0
        %273 = vmatprep.subr.mxu0 0.0
        %274 = vmatpush1.xpose.msra.mxu0 0.0
        %275 = vmatprep.subr.mxu0 0.0
        %276 = vmatpush1.xpose.msra.mxu0 0.0
        %277 = vmatprep.subr.mxu0 0.0
        %278 = vmatpush1.xpose.msra.mxu0 0.0
        %279 = vmatprep.subr.mxu0 0.0
        %280 = vmatpush1.xpose.msra.mxu0 0.0
        %281 = vmatprep.subr.mxu0 0.0
        %282 = vmatpush1.xpose.msra.mxu0 0.0
        %283 = vmatprep.subr.mxu0 0.0
        %284 = vmatpush1.xpose.msra.mxu0 0.0
        %285 = vmatprep.subr.mxu0 %v251
        %286 = vmatpush1.xpose.msra.mxu0 %v250
        %287 = vmatprep.subr.mxu0 0.0
        %288 = vmatpush2.xpose.msra.mxu0 0.0
        %289 = vmatprep.subr.mxu0 0.0
        %290 = vmatpush2.xpose.msra.mxu0 0.0
        %291 = vmatprep.subr.mxu0 0.0
        %292 = vmatpush2.xpose.msra.mxu0 0.0
        %293 = vmatprep.subr.mxu0 0.0
        %294 = vmatpush2.xpose.msra.mxu0 0.0
        %295 = vmatprep.subr.mxu0 0.0
        %296 = vmatpush2.xpose.msra.mxu0 0.0
        %297 = vmatprep.subr.mxu0 0.0
        %298 = vmatpush2.xpose.msra.mxu0 0.0
        %299 = vmatprep.subr.mxu0 0.0
        %300 = vmatpush2.xpose.msra.mxu0 0.0
        %301 = vmatprep.subr.mxu0 0.0
        %302 = vmatpush2.xpose.msra.mxu0 0.0
        %303 = vmatprep.subr.mxu0 0.0
        %304 = vmatpush2.xpose.msra.mxu0 0.0
        %305 = vmatprep.subr.mxu0 0.0
        %306 = vmatpush2.xpose.msra.mxu0 0.0
        %307 = vmatprep.subr.mxu0 0.0
        %308 = vmatpush2.xpose.msra.mxu0 0.0
        %309 = vmatprep.subr.mxu0 0.0
        %310 = vmatpush2.xpose.msra.mxu0 0.0
        %311 = vmatprep.subr.mxu0 0.0
        %312 = vmatpush2.xpose.msra.mxu0 0.0
        %313 = vmatprep.subr.mxu0 0.0
        %314 = vmatpush2.xpose.msra.mxu0 0.0
        %315 = vmatprep.subr.mxu0 0.0
        %316 = vmatpush2.xpose.msra.mxu0 0.0
        %317 = vmatprep.subr.mxu0 0.0
        %318 = vmatpush2.xpose.msra.mxu0 0.0
        %319 = vmatprep.mubr.f32.mxu0 %v248
        %320 = vmatmul.mubr.f32.gmra.mxu0 %v247
        %v321 = vpop.f32.mrf.mxu0
        %v322 = vadd.f32 0.0, %v321
        %v323 = vpop.f32.mrf.mxu0
        %324 = vdwg.mxu0
        %v325 = vmul.f32 %v247, %v247
        %v326 = vmul.f32 %v248, %v248
        %v327 = vadd.f32 %v325, %v326
        %328 = vadd.xlane.f32.xlu0 %v327
        %v329 = vpop.xlane.xlu0 %328
        %v330 = vmul.f32 %v250, %v250
        %v331 = vmul.f32 %v251, %v251
        %332 = vmatprep.subr.mxu0 0.0
        %333 = vmatpush1.xpose.msra.mxu0 0.0
        %334 = vmatprep.subr.mxu0 0.0
        %335 = vmatpush1.xpose.msra.mxu0 0.0
        %336 = vmatprep.subr.mxu0 0.0
        %337 = vmatpush1.xpose.msra.mxu0 0.0
        %338 = vmatprep.subr.mxu0 0.0
        %339 = vmatpush1.xpose.msra.mxu0 0.0
        %340 = vmatprep.subr.mxu0 0.0
        %341 = vmatpush1.xpose.msra.mxu0 0.0
        %342 = vmatprep.subr.mxu0 0.0
        %343 = vmatpush1.xpose.msra.mxu0 0.0
        %344 = vmatprep.subr.mxu0 0.0
        %345 = vmatpush1.xpose.msra.mxu0 0.0
        %346 = vmatprep.subr.mxu0 0.0
        %347 = vmatpush1.xpose.msra.mxu0 0.0
        %348 = vmatprep.subr.mxu0 0.0
        %349 = vmatpush1.xpose.msra.mxu0 0.0
        %350 = vmatprep.subr.mxu0 0.0
        %351 = vmatpush1.xpose.msra.mxu0 0.0
        %352 = vmatprep.subr.mxu0 0.0
        %353 = vmatpush1.xpose.msra.mxu0 0.0
        %354 = vmatprep.subr.mxu0 0.0
        %355 = vmatpush1.xpose.msra.mxu0 0.0
        %356 = vmatprep.subr.mxu0 0.0
        %357 = vmatpush1.xpose.msra.mxu0 0.0
        %358 = vmatprep.subr.mxu0 0.0
        %359 = vmatpush1.xpose.msra.mxu0 0.0
        %360 = vmatprep.subr.mxu0 0.0
        %361 = vmatpush1.xpose.msra.mxu0 0.0
        %362 = vmatprep.subr.mxu0 %v331
        %363 = vmatpush1.xpose.msra.mxu0 %v330
        %364 = vmatprep.subr.mxu0 0.0
        %365 = vmatpush2.xpose.msra.mxu0 0.0
        %366 = vmatprep.subr.mxu0 0.0
        %367 = vmatpush2.xpose.msra.mxu0 0.0
        %368 = vmatprep.subr.mxu0 0.0
        %369 = vmatpush2.xpose.msra.mxu0 0.0
        %370 = vmatprep.subr.mxu0 0.0
        %371 = vmatpush2.xpose.msra.mxu0 0.0
        %372 = vmatprep.subr.mxu0 0.0
        %373 = vmatpush2.xpose.msra.mxu0 0.0
        %374 = vmatprep.subr.mxu0 0.0
        %375 = vmatpush2.xpose.msra.mxu0 0.0
        %376 = vmatprep.subr.mxu0 0.0
        %377 = vmatpush2.xpose.msra.mxu0 0.0
        %378 = vmatprep.subr.mxu0 0.0
        %379 = vmatpush2.xpose.msra.mxu0 0.0
        %380 = vmatprep.subr.mxu0 0.0
        %381 = vmatpush2.xpose.msra.mxu0 0.0
        %382 = vmatprep.subr.mxu0 0.0
        %383 = vmatpush2.xpose.msra.mxu0 0.0
        %384 = vmatprep.subr.mxu0 0.0
        %385 = vmatpush2.xpose.msra.mxu0 0.0
        %386 = vmatprep.subr.mxu0 0.0
        %387 = vmatpush2.xpose.msra.mxu0 0.0
        %388 = vmatprep.subr.mxu0 0.0
        %389 = vmatpush2.xpose.msra.mxu0 0.0
        %390 = vmatprep.subr.mxu0 0.0
        %391 = vmatpush2.xpose.msra.mxu0 0.0
        %392 = vmatprep.subr.mxu0 0.0
        %393 = vmatpush2.xpose.msra.mxu0 0.0
        %394 = vmatprep.subr.mxu0 0.0
        %395 = vmatpush2.xpose.msra.mxu0 0.0
        %396 = vmatprep.mubr.f32.mxu0 1.0
        %397 = vmatmul.mubr.f32.gmra.mxu0 1.0
        %v398 = vpop.f32.mrf.mxu0
        %v399 = vadd.f32 0.0, %v398
        %v400 = vpop.f32.mrf.mxu0
        %401 = vdwg.mxu0
        %v402 = vmax.f32 %v329, 1e-24
        %v403 = vrsqrt.pop %v402
        %v404 = vmul.f32 %v403, %v243
        %v405 = vmax.f32 %v399, 1e-24
        %v406 = vrsqrt.pop %v405
        %408 = vset.pattern.permute.xlu0 0
        %409 = vperm.xlu0 %408, %v404
        %v410 = vpop.permute.xlu0 %409
        %v412 = vmul.f32 %v322, %v410
        %v413 = vlaneseq
        %v414 = vshrl.u32 %v413, 7
        %v415 = vsub.s32 0, %v414
        %v416 = vrot.slane %v406, %v415
        %v417 = vmul.f32 %v412, %v416
        %v418 = vadd.f32 %v417, %v244
        %vm419 = vcmask 64512
        %v420 = vsel %vm419, %v418, -inf
        %421 = vmax.xlane.f32.xlu0 %v420
        %v422 = vpop.xlane.xlu0 %421
        %v423 = vsub.f32 %v418, %v422
        %v424 = vmul.f32 %v423, 1.442695
        %v425 = vpow.pop %v424
        %v426 = vsel %vm419, %v425, 0.0
        %427 = vadd.xlane.f32.xlu0 %v426
        %v428 = vpop.xlane.xlu0 %427
        %v429 = vrcp.pop %v428
        %v430 = vmul.f32 %v425, %v429
        %v432 = vsel %vm419, %v245, 0
        %434 = vmatprep.subr.mxu0 0.0
        %435 = vmatpush1.msra.mxu0 0.0
        %436 = vmatprep.subr.mxu0 0.0
        %437 = vmatpush1.msra.mxu0 0.0
        %438 = vmatprep.subr.mxu0 0.0
        %439 = vmatpush1.msra.mxu0 0.0
        %440 = vmatprep.subr.mxu0 0.0
        %441 = vmatpush1.msra.mxu0 0.0
        %442 = vmatprep.subr.mxu0 0.0
        %443 = vmatpush1.msra.mxu0 0.0
        %444 = vmatprep.subr.mxu0 0.0
        %445 = vmatpush1.msra.mxu0 0.0
        %446 = vmatprep.subr.mxu0 0.0
        %447 = vmatpush1.msra.mxu0 0.0
        %448 = vmatprep.subr.mxu0 0.0
        %449 = vmatpush1.msra.mxu0 0.0
        %450 = vmatprep.subr.mxu0 0.0
        %451 = vmatpush1.msra.mxu0 0.0
        %452 = vmatprep.subr.mxu0 0.0
        %453 = vmatpush1.msra.mxu0 0.0
        %454 = vmatprep.subr.mxu0 0.0
        %455 = vmatpush1.msra.mxu0 0.0
        %456 = vmatprep.subr.mxu0 0.0
        %457 = vmatpush1.msra.mxu0 0.0
        %458 = vmatprep.subr.mxu0 0.0
        %459 = vmatpush1.msra.mxu0 0.0
        %460 = vmatprep.subr.mxu0 0.0
        %461 = vmatpush1.msra.mxu0 0.0
        %462 = vmatprep.subr.mxu0 0.0
        %463 = vmatpush1.msra.mxu0 0.0
        %464 = vmatprep.subr.mxu0 0.0
        %465 = vmatpush1.msra.mxu0 %v430
        %466 = vmatprep.subr.mxu0 0.0
        %467 = vmatpush2.msra.mxu0 0.0
        %468 = vmatprep.subr.mxu0 0.0
        %469 = vmatpush2.msra.mxu0 0.0
        %470 = vmatprep.subr.mxu0 0.0
        %471 = vmatpush2.msra.mxu0 0.0
        %472 = vmatprep.subr.mxu0 0.0
        %473 = vmatpush2.msra.mxu0 0.0
        %474 = vmatprep.subr.mxu0 0.0
        %475 = vmatpush2.msra.mxu0 0.0
        %476 = vmatprep.subr.mxu0 0.0
        %477 = vmatpush2.msra.mxu0 0.0
        %478 = vmatprep.subr.mxu0 0.0
        %479 = vmatpush2.msra.mxu0 0.0
        %480 = vmatprep.subr.mxu0 0.0
        %481 = vmatpush2.msra.mxu0 0.0
        %482 = vmatprep.subr.mxu0 0.0
        %483 = vmatpush2.msra.mxu0 0.0
        %484 = vmatprep.subr.mxu0 0.0
        %485 = vmatpush2.msra.mxu0 0.0
        %486 = vmatprep.subr.mxu0 0.0
        %487 = vmatpush2.msra.mxu0 0.0
        %488 = vmatprep.subr.mxu0 0.0
        %489 = vmatpush2.msra.mxu0 0.0
        %490 = vmatprep.subr.mxu0 0.0
        %491 = vmatpush2.msra.mxu0 0.0
        %492 = vmatprep.subr.mxu0 0.0
        %493 = vmatpush2.msra.mxu0 0.0
        %494 = vmatprep.subr.mxu0 0.0
        %495 = vmatpush2.msra.mxu0 0.0
        %496 = vmatprep.subr.mxu0 0.0
        %497 = vmatpush2.msra.mxu0 0.0
        %498 = vmatprep.mubr.f32.mxu0 0.0
        %499 = vmatmul.mubr.f32.gmra.mxu0 %v432
        %v500 = vpop.f32.mrf.mxu0
        %v501 = vadd.f32 0.0, %v500
        %v502 = vpop.f32.mrf.mxu0
        %503 = vdwg.mxu0
        %505 = vset.pattern.permute.xlu0 0
        %506 = vperm.xlu0 %505, %v246
        %v507 = vpop.permute.xlu0 %506
        %v510 = vsel %vm419, %v501, 0
        %512 = vmatprep.subr.mxu0 0.0
        %513 = vmatpush1.msra.mxu0 0.0
        %514 = vmatprep.subr.mxu0 0.0
        %515 = vmatpush1.msra.mxu0 0.0
        %516 = vmatprep.subr.mxu0 0.0
        %517 = vmatpush1.msra.mxu0 0.0
        %518 = vmatprep.subr.mxu0 0.0
        %519 = vmatpush1.msra.mxu0 0.0
        %520 = vmatprep.subr.mxu0 0.0
        %521 = vmatpush1.msra.mxu0 0.0
        %522 = vmatprep.subr.mxu0 0.0
        %523 = vmatpush1.msra.mxu0 0.0
        %524 = vmatprep.subr.mxu0 0.0
        %525 = vmatpush1.msra.mxu0 0.0
        %526 = vmatprep.subr.mxu0 0.0
        %527 = vmatpush1.msra.mxu0 0.0
        %528 = vmatprep.subr.mxu0 0.0
        %529 = vmatpush1.msra.mxu0 0.0
        %530 = vmatprep.subr.mxu0 0.0
        %531 = vmatpush1.msra.mxu0 0.0
        %532 = vmatprep.subr.mxu0 0.0
        %533 = vmatpush1.msra.mxu0 0.0
        %534 = vmatprep.subr.mxu0 0.0
        %535 = vmatpush1.msra.mxu0 0.0
        %536 = vmatprep.subr.mxu0 0.0
        %537 = vmatpush1.msra.mxu0 0.0
        %538 = vmatprep.subr.mxu0 0.0
        %539 = vmatpush1.msra.mxu0 0.0
        %540 = vmatprep.subr.mxu0 0.0
        %541 = vmatpush1.msra.mxu0 0.0
        %542 = vmatprep.subr.mxu0 %v254
        %543 = vmatpush1.msra.mxu0 %v253
        %544 = vmatprep.subr.mxu0 0.0
        %545 = vmatpush2.msra.mxu0 0.0
        %546 = vmatprep.subr.mxu0 0.0
        %547 = vmatpush2.msra.mxu0 0.0
        %548 = vmatprep.subr.mxu0 0.0
        %549 = vmatpush2.msra.mxu0 0.0
        %550 = vmatprep.subr.mxu0 0.0
        %551 = vmatpush2.msra.mxu0 0.0
        %552 = vmatprep.subr.mxu0 0.0
        %553 = vmatpush2.msra.mxu0 0.0
        %554 = vmatprep.subr.mxu0 0.0
        %555 = vmatpush2.msra.mxu0 0.0
        %556 = vmatprep.subr.mxu0 0.0
        %557 = vmatpush2.msra.mxu0 0.0
        %558 = vmatprep.subr.mxu0 0.0
        %559 = vmatpush2.msra.mxu0 0.0
        %560 = vmatprep.subr.mxu0 0.0
        %561 = vmatpush2.msra.mxu0 0.0
        %562 = vmatprep.subr.mxu0 0.0
        %563 = vmatpush2.msra.mxu0 0.0
        %564 = vmatprep.subr.mxu0 0.0
        %565 = vmatpush2.msra.mxu0 0.0
        %566 = vmatprep.subr.mxu0 0.0
        %567 = vmatpush2.msra.mxu0 0.0
        %568 = vmatprep.subr.mxu0 0.0
        %569 = vmatpush2.msra.mxu0 0.0
        %570 = vmatprep.subr.mxu0 0.0
        %571 = vmatpush2.msra.mxu0 0.0
        %572 = vmatprep.subr.mxu0 0.0
        %573 = vmatpush2.msra.mxu0 0.0
        %574 = vmatprep.subr.mxu0 0.0
        %575 = vmatpush2.msra.mxu0 0.0
        %576 = vmatprep.mubr.f32.mxu0 0.0
        %577 = vmatmul.mubr.f32.gmra.mxu0 %v510
        %v578 = vpop.f32.mrf.mxu0
        %v579 = vadd.f32 %v507, %v578
        %v580 = vpop.f32.mrf.mxu0
        %v581 = vadd.f32 %v507, %v580
        %582 = vdwg.mxu0
        %583 = vst [vmem:[%s242] sm:$0xff] %v579
        %584 = vst [vmem:[%s242 + $0x8] sm:$0xff] %v581
        %s585 = sand.u32 %s140, 1
        %s586 = scalar_lea.sflag [#allocation4], %s585
        %s587 = sand.u32 %s140, 1
        %s588 = smul.addr %s587, 16
        %s589 = scalar_lea.vmem [#allocation5], %s588
        // Predicated region
        $region45: #{tpu_custom_call.1} parent=39 // pred_check
          %p590 = pneg %p150
        $region46: #{tpu_custom_call.1} parent=39 // pred_check_branch
          %592 = sbr.rel (%p590) target = $region48
        $region47: #{tpu_custom_call.1} parent=39 // pred_region
          %s594 = ssub.s32 256, 256
          %595 = vsyncadd %s586, %s594
          %s596 = smul.addr %s22, 2
          %s597 = smul.addr %s596, 128
          %s598 = scalar_lea.hbm %s5, %s597
          %s600 = sshll.u32 %s589, 4
          %s601 = int_to_ptr.vmem [resolvable:$true] %s600
          %603 = dma.vmem_to_hbm [thread:$0]  %s601, 256, %s598, %s586
        $region48: #{tpu_custom_call.1} parent=39 // pred_fallthru
          _
      $region40: #{tpu_custom_call.1} parent=5 // pred_fallthru
        _
      %p604 = scmp.le.s32.totalorder 2, %s17
      // Predicated region
      $region49: #{tpu_custom_call.1} parent=5 // pred_check
        %p605 = pneg %p604
      $region50: #{tpu_custom_call.1} parent=5 // pred_check_branch
        %607 = sbr.rel (%p605) target = $region52
      $region51: #{tpu_custom_call.1} parent=5 // pred_region
        %s608 = ssub.s32 %s17, 2
        // Predicated region
        $region53: #{tpu_custom_call.1} parent=51 // pred_check
          %p609 = pneg %p156
        $region54: #{tpu_custom_call.1} parent=51 // pred_check_branch
          %611 = sbr.rel (%p609) target = $region56
        $region55: #{tpu_custom_call.1} parent=51 // pred_region
          %s612 = sand.u32 %s141, 1
          %s613 = scalar_lea.sflag [#allocation4], %s612
          %s614 = sand.u32 %s141, 1
          %s615 = smul.addr %s614, 16
          %s616 = scalar_lea.vmem [#allocation5], %s615
          %617 = dma.done %s613, 256
        $region56: #{tpu_custom_call.1} parent=51 // pred_fallthru
          _
      $region52: #{tpu_custom_call.1} parent=5 // pred_fallthru
        _
    $region6: #{tpu_custom_call.1} parent=1 // loop_footer
      %s21 = sadd.s32 1, %s17
    $region7: #{tpu_custom_call.1} parent=1 // loop_footer_branch
      %16 = sbr.rel target = $region3
    $region8: #{tpu_custom_call.1} parent=1 // loop_exit
      _
    %618 = vsyncpa [#allocation3], 1
    %s619 = scalar_lea.sflag [#allocation3], 1
    %620 = vsyncpa %s619, 1
    %621 = vsyncpa [#allocation4], 1
    %s622 = scalar_lea.sflag [#allocation4], 1
    %623 = vsyncpa %s622, 1

</llo_original>
